<compile_context>
chip_gen: v7x
topology: tpu7x:2x2x1
jax: 0.10.0
libtpu: 0.0.40
codegen_flags: <defaults>
</compile_context>

<pallas_src>
import jax
import jax.numpy as jnp
from jax import lax
from jax.experimental import pallas as pl
from jax.experimental.pallas import tpu as pltpu


def wat_kernel(x_ref, haar_ref, w1_ref, b1_ref, w2_ref, b2_ref, o_ref):
    # x_ref / o_ref: (B_tile, C, HWp)    haar_ref: (1, 1, HWp)
    # w1: (C, Cr)  b1: (1, Cr)  w2: (Cr, C)  b2: (1, C)
    x = x_ref[...]                                               # (Bt, C, HWp) f32

    # squeeze[b, c] = sum_p x[b, c, p] * haar[p]   (VPU mul + XLU lane reduce)
    squeeze = jnp.sum(x * haar_ref[...], axis=-1)                # (Bt, C) f32, exact

    # Batched squeeze-excite MLP over the B_tile rows (tiny dots -> HIGHEST is free).
    h1 = jnp.dot(squeeze, w1_ref[...],
                 preferred_element_type=jnp.float32,
                 precision=lax.Precision.HIGHEST) + b1_ref[...]  # (Bt, Cr)
    h1 = jnp.maximum(h1, 0.0)                                    # ReLU
    logits = jnp.dot(h1, w2_ref[...],
                     preferred_element_type=jnp.float32,
                     precision=lax.Precision.HIGHEST) + b2_ref[...]  # (Bt, C)
    att = jax.nn.sigmoid(logits)                                 # (Bt, C)

    # Channel re-weighting; att broadcasts along the lane (HW) axis.
    o_ref[...] = (x * att[:, :, None]).astype(o_ref.dtype)


def wat_forward(x, w1, b1, w2, b2):
    """x: (B, C, H, W) NCHW float32 -> (B, C, H, W)."""
    B, C, H, W = x.shape
    HW = H * W
    Cr = w1.shape[1]

    # Pad the flattened spatial (lane) axis to a multiple of 128 for
    # lane-dense, unmasked stores.
    HWp = ((HW + 127) // 128) * 128
    xf = x.reshape(B, C, HW)
    if HWp != HW:
        xf = jnp.pad(xf, ((0, 0), (0, 0), (0, HWp - HW)))

    # Squeeze weight: 4/HW at odd columns of the original image, 0 elsewhere
    # (encodes the Haar 1/2 scale, the cA+cH band sum and the 1/(HW/4) mean).
    p = jnp.arange(HWp, dtype=jnp.int32)
    haar = jnp.where((p < HW) & ((p % W) % 2 == 1), 4.0 / HW, 0.0)
    haar = haar.astype(x.dtype).reshape(1, 1, HWp)               # lane-dense mask

    b1r = b1.reshape(1, Cr)
    b2r = b2.reshape(1, C)

    # Block-size heuristic: ~2 MiB streamed input blocks; keep >= 2 grid steps
    # when B >= 2 so v7x's two TensorCores both get work.
    bytes_per_b = C * HWp * 4
    b_tile = max(1, min(B, (2 << 20) // max(bytes_per_b, 1)))
    if B >= 2:
        b_tile = min(b_tile, max(1, B // 2))
    while B % b_tile:
        b_tile -= 1
    grid = (B // b_tile,)

    # Explicit VMEM budget: double-buffered in + out blocks + resident weights.
    blk_bytes = b_tile * bytes_per_b
    weight_bytes = 4 * (HWp + 2 * C * Cr + C + Cr)
    try:
        vmem_cap = int(pltpu.get_tpu_info().vmem_capacity_bytes)
    except Exception:
        vmem_cap = 64 << 20  # smallest per-core VMEM across current gens (v7x)
    vmem_limit = int(min(max(4 * blk_bytes + 2 * weight_bytes + (2 << 20),
                             16 << 20), vmem_cap))

    out = pl.pallas_call(
        wat_kernel,
        out_shape=jax.ShapeDtypeStruct((B, C, HWp), x.dtype),
        grid=grid,
        in_specs=[
            pl.BlockSpec((b_tile, C, HWp), lambda i: (i, 0, 0)),   # x, streamed
            pl.BlockSpec((1, 1, HWp), lambda i: (0, 0, 0)),        # haar mask (resident)
            pl.BlockSpec((C, Cr), lambda i: (0, 0)),               # fc1 weight
            pl.BlockSpec((1, Cr), lambda i: (0, 0)),               # fc1 bias
            pl.BlockSpec((Cr, C), lambda i: (0, 0)),               # fc2 weight
            pl.BlockSpec((1, C), lambda i: (0, 0)),                # fc2 bias
        ],
        out_specs=pl.BlockSpec((b_tile, C, HWp), lambda i: (i, 0, 0)),
        compiler_params=pltpu.CompilerParams(
            dimension_semantics=("parallel",),
            vmem_limit_bytes=vmem_limit,
        ),
    )(xf, haar, w1, b1r, w2, b2r)

    return out[:, :, :HW].reshape(B, C, H, W)


def wat_reference(x, w1, b1, w2, b2):
    """Pure-JAX reference mirroring the PyTorch forward (for validation)."""
    x01 = x[:, :, 0::2, :] / 2.0
    x02 = x[:, :, 1::2, :] / 2.0
    x1 = x01[:, :, :, 0::2]
    x2 = x02[:, :, :, 0::2]
    x3 = x01[:, :, :, 1::2]
    x4 = x02[:, :, :, 1::2]
    cA = x1 + x2 + x3 + x4
    cH = -x1 - x2 + x3 + x4
    f_dwt = cA + cH
    sq = f_dwt.reshape(f_dwt.shape[0], f_dwt.shape[1], -1).mean(axis=2)
    h1 = jax.nn.relu(jnp.dot(sq, w1, precision=lax.Precision.HIGHEST) + b1)
    att = jax.nn.sigmoid(jnp.dot(h1, w2, precision=lax.Precision.HIGHEST) + b2)
    return x * att[:, :, None, None]


def init_params(key, num_channels, reduction_ratio=2):
    """Deterministic init mimicking nn.Linear default (uniform +/- 1/sqrt(fan_in))."""
    c = num_channels
    cr = num_channels // reduction_ratio
    k1, k2, k3, k4 = jax.random.split(key, 4)
    bound1 = 1.0 / jnp.sqrt(c)
    bound2 = 1.0 / jnp.sqrt(cr)
    w1 = jax.random.uniform(k1, (c, cr), jnp.float32, -bound1, bound1)   # fc1.weight^T
    b1 = jax.random.uniform(k2, (cr,), jnp.float32, -bound1, bound1)     # fc1.bias
    w2 = jax.random.uniform(k3, (cr, c), jnp.float32, -bound2, bound2)   # fc2.weight^T
    b2 = jax.random.uniform(k4, (c,), jnp.float32, -bound2, bound2)      # fc2.bias
    return w1, b1, w2, b2


if __name__ == "__main__":
    B, C, H, W = 2, 4, 16, 16          # num_channels=4, reduction_ratio=2
    key = jax.random.PRNGKey(0)
    kx, kp = jax.random.split(key)
    x = jax.random.normal(kx, (B, C, H, W), jnp.float32)
    w1, b1, w2, b2 = init_params(kp, C, reduction_ratio=2)

    wat = jax.jit(wat_forward)
    out = wat(x, w1, b1, w2, b2)
    out = jax.block_until_ready(out)

    ref = wat_reference(x, w1, b1, w2, b2)
    assert out.shape == (B, C, H, W)
    assert jnp.allclose(out, ref, atol=1e-5, rtol=1e-5), "Pallas kernel mismatch vs reference"

    print("KERNEL_OK")
</pallas_src>

<mosaic_0001>
module attributes {stable_mosaic.version = 11 : i64} {
  func.func @wat_kernel(%arg0: i32, %arg1: memref<1x4x256xf32, #tpu.memory_space<vmem>>, %arg2: memref<1x1x256xf32, #tpu.memory_space<vmem>>, %arg3: memref<4x2xf32, #tpu.memory_space<vmem>>, %arg4: memref<1x2xf32, #tpu.memory_space<vmem>>, %arg5: memref<2x4xf32, #tpu.memory_space<vmem>>, %arg6: memref<1x4xf32, #tpu.memory_space<vmem>>, %arg7: memref<1x4x256xf32, #tpu.memory_space<vmem>>) attributes {dimension_semantics = [#tpu.dimension_semantics<parallel>], iteration_bounds = array<i64: 2>, scalar_prefetch = 0 : i64, scratch_operands = 0 : i64, tpu.core_type = #tpu.core_type<tc>, window_params = [{transform_indices = @transform_0, window_bounds = array<i64: 1, 4, 256>}, {pipeline_mode = #tpu.pipeline_mode<synchronous>, transform_indices = @transform_1, window_bounds = array<i64: 1, 1, 256>}, {pipeline_mode = #tpu.pipeline_mode<synchronous>, transform_indices = @transform_2, window_bounds = array<i64: 4, 2>}, {pipeline_mode = #tpu.pipeline_mode<synchronous>, transform_indices = @transform_3, window_bounds = array<i64: 1, 2>}, {pipeline_mode = #tpu.pipeline_mode<synchronous>, transform_indices = @transform_4, window_bounds = array<i64: 2, 4>}, {pipeline_mode = #tpu.pipeline_mode<synchronous>, transform_indices = @transform_5, window_bounds = array<i64: 1, 4>}, {transform_indices = @transform_6, window_bounds = array<i64: 1, 4, 256>}]} {
    %c0 = arith.constant 0 : index
    %c0_0 = arith.constant 0 : index
    %c0_1 = arith.constant 0 : index
    %0 = vector.load %arg1[%c0, %c0_0, %c0_1] : memref<1x4x256xf32, #tpu.memory_space<vmem>>, vector<1x4x256xf32>
    %c0_2 = arith.constant 0 : index
    %c0_3 = arith.constant 0 : index
    %c0_4 = arith.constant 0 : index
    %1 = vector.load %arg2[%c0_2, %c0_3, %c0_4] : memref<1x1x256xf32, #tpu.memory_space<vmem>>, vector<1x1x256xf32>
    %2 = vector.broadcast %1 : vector<1x1x256xf32> to vector<1x4x256xf32>
    %3 = arith.mulf %0, %2 : vector<1x4x256xf32>
    %cst = arith.constant dense<0.000000e+00> : vector<1x4xf32>
    %4 = vector.multi_reduction <add>, %3, %cst [2] : vector<1x4x256xf32> to vector<1x4xf32>
    %c0_5 = arith.constant 0 : index
    %c0_6 = arith.constant 0 : index
    %5 = vector.load %arg3[%c0_5, %c0_6] : memref<4x2xf32, #tpu.memory_space<vmem>>, vector<4x2xf32>
    %cst_7 = arith.constant dense<0.000000e+00> : vector<1x2xf32>
    %6 = tpu.matmul %4, %5, %cst_7 {dimension_numbers = #tpu.dot_dimension_numbers<[1], [0], [0], [1], [0, 0, 1, 1], [], []>, precision = #tpu.contract_precision<fp32>} : vector<1x4xf32>, vector<4x2xf32>, vector<1x2xf32> -> vector<1x2xf32>
    %c0_8 = arith.constant 0 : index
    %c0_9 = arith.constant 0 : index
    %7 = vector.load %arg4[%c0_8, %c0_9] : memref<1x2xf32, #tpu.memory_space<vmem>>, vector<1x2xf32>
    %8 = arith.addf %6, %7 : vector<1x2xf32>
    %cst_10 = arith.constant 0.000000e+00 : f32
    %9 = vector.broadcast %cst_10 : f32 to vector<1x2xf32>
    %10 = arith.maximumf %8, %9 : vector<1x2xf32>
    %c0_11 = arith.constant 0 : index
    %c0_12 = arith.constant 0 : index
    %11 = vector.load %arg5[%c0_11, %c0_12] : memref<2x4xf32, #tpu.memory_space<vmem>>, vector<2x4xf32>
    %cst_13 = arith.constant dense<0.000000e+00> : vector<1x4xf32>
    %12 = tpu.matmul %10, %11, %cst_13 {dimension_numbers = #tpu.dot_dimension_numbers<[1], [0], [0], [1], [0, 0, 1, 1], [], []>, precision = #tpu.contract_precision<fp32>} : vector<1x2xf32>, vector<2x4xf32>, vector<1x4xf32> -> vector<1x4xf32>
    %c0_14 = arith.constant 0 : index
    %c0_15 = arith.constant 0 : index
    %13 = vector.load %arg6[%c0_14, %c0_15] : memref<1x4xf32, #tpu.memory_space<vmem>>, vector<1x4xf32>
    %14 = arith.addf %12, %13 : vector<1x4xf32>
    %15 = arith.negf %14 : vector<1x4xf32>
    %16 = math.exp %15 : vector<1x4xf32>
    %cst_16 = arith.constant 1.000000e+00 : f32
    %17 = vector.broadcast %cst_16 : f32 to vector<1x4xf32>
    %18 = arith.addf %17, %16 : vector<1x4xf32>
    %19 = arith.divf %17, %18 : vector<1x4xf32>
    %20 = vector.shape_cast %19 : vector<1x4xf32> to vector<1x4x1xf32>
    %21 = vector.broadcast %20 : vector<1x4x1xf32> to vector<1x4x256xf32>
    %22 = arith.mulf %0, %21 : vector<1x4x256xf32>
    %c0_17 = arith.constant 0 : index
    %c0_18 = arith.constant 0 : index
    %c0_19 = arith.constant 0 : index
    %23 = vector.load %arg7[%c0_17, %c0_18, %c0_19] : memref<1x4x256xf32, #tpu.memory_space<vmem>>, vector<1x4x256xf32>
    tpu.vector_store %arg7[%c0_17, %c0_18, %c0_19], %22 {strides = array<i32>} : memref<1x4x256xf32, #tpu.memory_space<vmem>>, vector<1x4x256xf32>,
    return
  }
  func.func @transform_0(%arg0: i32) -> (i32, i32, i32) {
    %c0_i32 = arith.constant 0 : i32
    %c0_i32_0 = arith.constant 0 : i32
    %c0_i32_1 = arith.constant 0 : i32
    return %arg0, %c0_i32, %c0_i32_0 : i32, i32, i32
  }
  func.func @transform_1(%arg0: i32) -> (i32, i32, i32) {
    %c0_i32 = arith.constant 0 : i32
    %c0_i32_0 = arith.constant 0 : i32
    %c0_i32_1 = arith.constant 0 : i32
    %c0_i32_2 = arith.constant 0 : i32
    return %c0_i32, %c0_i32_0, %c0_i32_1 : i32, i32, i32
  }
  func.func @transform_2(%arg0: i32) -> (i32, i32) {
    %c0_i32 = arith.constant 0 : i32
    %c0_i32_0 = arith.constant 0 : i32
    %c0_i32_1 = arith.constant 0 : i32
    return %c0_i32, %c0_i32_0 : i32, i32
  }
  func.func @transform_3(%arg0: i32) -> (i32, i32) {
    %c0_i32 = arith.constant 0 : i32
    %c0_i32_0 = arith.constant 0 : i32
    %c0_i32_1 = arith.constant 0 : i32
    return %c0_i32, %c0_i32_0 : i32, i32
  }
  func.func @transform_4(%arg0: i32) -> (i32, i32) {
    %c0_i32 = arith.constant 0 : i32
    %c0_i32_0 = arith.constant 0 : i32
    %c0_i32_1 = arith.constant 0 : i32
    return %c0_i32, %c0_i32_0 : i32, i32
  }
  func.func @transform_5(%arg0: i32) -> (i32, i32) {
    %c0_i32 = arith.constant 0 : i32
    %c0_i32_0 = arith.constant 0 : i32
    %c0_i32_1 = arith.constant 0 : i32
    return %c0_i32, %c0_i32_0 : i32, i32
  }
  func.func @transform_6(%arg0: i32) -> (i32, i32, i32) {
    %c0_i32 = arith.constant 0 : i32
    %c0_i32_0 = arith.constant 0 : i32
    %c0_i32_1 = arith.constant 0 : i32
    return %arg0, %c0_i32, %c0_i32_0 : i32, i32, i32
  }
}

</mosaic_0001>

<llo_original>
// kernel: wat_forward.1
$region0: #{wat_forward.1}
  #allocation0 [shape = 'u32[]', space=smem, size = 0x4, offset = 0x4, fixed_abs, tag = 'smem constant byte address 0x4 - core index']
  #allocation1 [shape = 'u32[144,128]{1,0:T(1,128)}', space=vmem, size = 0x12000, scoped, tag = 'internal scratch']
  %s0 = inlined_call_operand.vmem [shape: f32[2,4,256], index: 0, kind: input, shape index: {}]
  %s1 = inlined_call_operand.vmem [shape: f32[1,1,256], index: 1, kind: input, shape index: {}]
  %s2 = inlined_call_operand.vmem [shape: f32[4,2], index: 2, kind: input, shape index: {}]
  %s3 = inlined_call_operand.vmem [shape: f32[1,2], index: 3, kind: input, shape index: {}]
  %s4 = inlined_call_operand.vmem [shape: f32[2,4], index: 4, kind: input, shape index: {}]
  %s5 = inlined_call_operand.vmem [shape: f32[1,4], index: 5, kind: input, shape index: {}]
  %s6 = inlined_call_operand.vmem [shape: f32[2,4,256], index: 6, kind: output, shape index: {}]
  %s7 = sld [smem:[#allocation0]]
  $region57: #{wat_forward.1} parent=0
    _
  %s9 = ssub.s32 1, %s7
  %s10 = scalar_select 0, %s9, %s7
  loop: start=0, step=1, limit=4
  $region2: #{wat_forward.1} parent=0 // loop_pre_header
    _
  $region3: #{wat_forward.1} parent=0 // loop_header
    %s12 = sphi 0, %s16
    %p13 = scmp.ge.s32.totalorder %s12, 4
    %s22 = sphi 0, %s24
    %s25 = sphi 0, %s22
    %s26 = sphi 0, %s25
    %s42 = sphi 0, %s26
    %s46 = sphi 0, %s46
    %s48 = sphi 0, %s46
    %s49 = sphi 0, %s48
    %s63 = sphi 0, %s49
    %s67 = sphi 0, %s67
    %s69 = sphi 0, %s67
    %s70 = sphi 0, %s69
    %s84 = sphi 0, %s70
    %s88 = sphi 0, %s88
    %s90 = sphi 0, %s88
    %s91 = sphi 0, %s90
    %s105 = sphi 0, %s91
    %s109 = sphi 0, %s109
    %s111 = sphi 0, %s109
    %s112 = sphi 0, %s111
    %s126 = sphi 0, %s112
    %s130 = sphi 0, %s130
    %s132 = sphi 0, %s130
    %s133 = sphi 0, %s132
    %s147 = sphi 0, %s133
    %s153 = sphi 0, %s155
    %s156 = sphi 0, %s153
    %s157 = sphi 0, %s156
    %s173 = sphi 0, %s157
  $region4: #{wat_forward.1} parent=0 // loop_header_branch
    %15 = sbr.rel (%p13) target = $region8
  $region5: #{wat_forward.1} parent=0 // loop_body
    %s17 = ssub.s32 %s12, 1
    %s18 = ssub.s32 %s12, 2
    %s19 = sadd.s32 %s12, 1
    %s20 = ssub.s32 %s12, %s19
    %p21 = scmp.eq.s32.totalorder %s20, 0
    %s23 = sadd.s32 %s22, 1
    %s24 = scalar_select %p21, %s22, %s23
    %p27 = pneg %p21
    %p28 = scmp.eq.s32.totalorder %s12, 1
    %p29 = por %p27, %p28
    %p30 = scmp.ne.s32.totalorder %s22, %s25
    %p31 = scmp.eq.s32.totalorder %s12, 0
    %p32 = por %p30, %p31
    %p33 = scmp.ne.s32.totalorder %s22, %s25
    %p34 = scmp.eq.s32.totalorder %s17, 1
    %p35 = por %p33, %p34
    %p36 = scmp.ne.s32.totalorder %s25, %s26
    %p37 = scmp.eq.s32.totalorder %s17, 0
    %p38 = por %p36, %p37
    %p39 = scmp.ne.s32.totalorder %s25, %s26
    %p40 = scmp.eq.s32.totalorder %s18, 1
    %p41 = por %p39, %p40
    %p43 = scmp.ne.s32.totalorder %s26, %s42
    %p44 = scmp.eq.s32.totalorder %s18, 0
    %p45 = por %p43, %p44
    %s47 = sadd.s32 %s46, 1
    %p50 = scmp.eq.s32.totalorder %s12, 1
    %p51 = scmp.ne.s32.totalorder %s46, %s48
    %p52 = scmp.eq.s32.totalorder %s12, 0
    %p53 = por %p51, %p52
    %p54 = scmp.ne.s32.totalorder %s46, %s48
    %p55 = scmp.eq.s32.totalorder %s17, 1
    %p56 = por %p54, %p55
    %p57 = scmp.ne.s32.totalorder %s48, %s49
    %p58 = scmp.eq.s32.totalorder %s17, 0
    %p59 = por %p57, %p58
    %p60 = scmp.ne.s32.totalorder %s48, %s49
    %p61 = scmp.eq.s32.totalorder %s18, 1
    %p62 = por %p60, %p61
    %p64 = scmp.ne.s32.totalorder %s49, %s63
    %p65 = scmp.eq.s32.totalorder %s18, 0
    %p66 = por %p64, %p65
    %s68 = sadd.s32 %s67, 1
    %p71 = scmp.eq.s32.totalorder %s12, 1
    %p72 = scmp.ne.s32.totalorder %s67, %s69
    %p73 = scmp.eq.s32.totalorder %s12, 0
    %p74 = por %p72, %p73
    %p75 = scmp.ne.s32.totalorder %s67, %s69
    %p76 = scmp.eq.s32.totalorder %s17, 1
    %p77 = por %p75, %p76
    %p78 = scmp.ne.s32.totalorder %s69, %s70
    %p79 = scmp.eq.s32.totalorder %s17, 0
    %p80 = por %p78, %p79
    %p81 = scmp.ne.s32.totalorder %s69, %s70
    %p82 = scmp.eq.s32.totalorder %s18, 1
    %p83 = por %p81, %p82
    %p85 = scmp.ne.s32.totalorder %s70, %s84
    %p86 = scmp.eq.s32.totalorder %s18, 0
    %p87 = por %p85, %p86
    %s89 = sadd.s32 %s88, 1
    %p92 = scmp.eq.s32.totalorder %s12, 1
    %p93 = scmp.ne.s32.totalorder %s88, %s90
    %p94 = scmp.eq.s32.totalorder %s12, 0
    %p95 = por %p93, %p94
    %p96 = scmp.ne.s32.totalorder %s88, %s90
    %p97 = scmp.eq.s32.totalorder %s17, 1
    %p98 = por %p96, %p97
    %p99 = scmp.ne.s32.totalorder %s90, %s91
    %p100 = scmp.eq.s32.totalorder %s17, 0
    %p101 = por %p99, %p100
    %p102 = scmp.ne.s32.totalorder %s90, %s91
    %p103 = scmp.eq.s32.totalorder %s18, 1
    %p104 = por %p102, %p103
    %p106 = scmp.ne.s32.totalorder %s91, %s105
    %p107 = scmp.eq.s32.totalorder %s18, 0
    %p108 = por %p106, %p107
    %s110 = sadd.s32 %s109, 1
    %p113 = scmp.eq.s32.totalorder %s12, 1
    %p114 = scmp.ne.s32.totalorder %s109, %s111
    %p115 = scmp.eq.s32.totalorder %s12, 0
    %p116 = por %p114, %p115
    %p117 = scmp.ne.s32.totalorder %s109, %s111
    %p118 = scmp.eq.s32.totalorder %s17, 1
    %p119 = por %p117, %p118
    %p120 = scmp.ne.s32.totalorder %s111, %s112
    %p121 = scmp.eq.s32.totalorder %s17, 0
    %p122 = por %p120, %p121
    %p123 = scmp.ne.s32.totalorder %s111, %s112
    %p124 = scmp.eq.s32.totalorder %s18, 1
    %p125 = por %p123, %p124
    %p127 = scmp.ne.s32.totalorder %s112, %s126
    %p128 = scmp.eq.s32.totalorder %s18, 0
    %p129 = por %p127, %p128
    %s131 = sadd.s32 %s130, 1
    %p134 = scmp.eq.s32.totalorder %s12, 1
    %p135 = scmp.ne.s32.totalorder %s130, %s132
    %p136 = scmp.eq.s32.totalorder %s12, 0
    %p137 = por %p135, %p136
    %p138 = scmp.ne.s32.totalorder %s130, %s132
    %p139 = scmp.eq.s32.totalorder %s17, 1
    %p140 = por %p138, %p139
    %p141 = scmp.ne.s32.totalorder %s132, %s133
    %p142 = scmp.eq.s32.totalorder %s17, 0
    %p143 = por %p141, %p142
    %p144 = scmp.ne.s32.totalorder %s132, %s133
    %p145 = scmp.eq.s32.totalorder %s18, 1
    %p146 = por %p144, %p145
    %p148 = scmp.ne.s32.totalorder %s133, %s147
    %p149 = scmp.eq.s32.totalorder %s18, 0
    %p150 = por %p148, %p149
    %s151 = ssub.s32 %s12, %s19
    %p152 = scmp.eq.s32.totalorder %s151, 0
    %s154 = sadd.s32 %s153, 1
    %s155 = scalar_select %p152, %s153, %s154
    %p158 = pneg %p152
    %p159 = scmp.eq.s32.totalorder %s12, 1
    %p160 = por %p158, %p159
    %p161 = scmp.ne.s32.totalorder %s153, %s156
    %p162 = scmp.eq.s32.totalorder %s12, 0
    %p163 = por %p161, %p162
    %p164 = scmp.ne.s32.totalorder %s153, %s156
    %p165 = scmp.eq.s32.totalorder %s17, 1
    %p166 = por %p164, %p165
    %p167 = scmp.ne.s32.totalorder %s156, %s157
    %p168 = scmp.eq.s32.totalorder %s17, 0
    %p169 = por %p167, %p168
    %p170 = scmp.ne.s32.totalorder %s156, %s157
    %p171 = scmp.eq.s32.totalorder %s18, 1
    %p172 = por %p170, %p171
    %p174 = scmp.ne.s32.totalorder %s157, %s173
    %p175 = scmp.eq.s32.totalorder %s18, 0
    %p176 = por %p174, %p175
    %p177 = scmp.le.s32.totalorder 1, %s12
    %p178 = scmp.lt.s32.totalorder %s12, 3
    %p179 = pnand %p177, %p178
    %p180 = pneg %p179
    // Predicated region
    $region9: #{wat_forward.1} parent=5 // pred_check
      _
    $region10: #{wat_forward.1} parent=5 // pred_check_branch
      %182 = sbr.rel (%p179) target = $region12
    $region11: #{wat_forward.1} parent=5 // pred_region
      %s183 = ssub.s32 %s12, 1
      // Predicated region
      $region13: #{wat_forward.1} parent=11 // pred_check
        %p184 = pneg %p59
      $region14: #{wat_forward.1} parent=11 // pred_check_branch
        %186 = sbr.rel (%p184) target = $region16
      $region15: #{wat_forward.1} parent=11 // pred_region
        _
      $region16: #{wat_forward.1} parent=11 // pred_fallthru
        _
      // Predicated region
      $region17: #{wat_forward.1} parent=11 // pred_check
        %p187 = pneg %p80
      $region18: #{wat_forward.1} parent=11 // pred_check_branch
        %189 = sbr.rel (%p187) target = $region20
      $region19: #{wat_forward.1} parent=11 // pred_region
        _
      $region20: #{wat_forward.1} parent=11 // pred_fallthru
        _
      // Predicated region
      $region21: #{wat_forward.1} parent=11 // pred_check
        %p190 = pneg %p101
      $region22: #{wat_forward.1} parent=11 // pred_check_branch
        %192 = sbr.rel (%p190) target = $region24
      $region23: #{wat_forward.1} parent=11 // pred_region
        _
      $region24: #{wat_forward.1} parent=11 // pred_fallthru
        _
      // Predicated region
      $region25: #{wat_forward.1} parent=11 // pred_check
        %p193 = pneg %p122
      $region26: #{wat_forward.1} parent=11 // pred_check_branch
        %195 = sbr.rel (%p193) target = $region28
      $region27: #{wat_forward.1} parent=11 // pred_region
        _
      $region28: #{wat_forward.1} parent=11 // pred_fallthru
        _
      // Predicated region
      $region29: #{wat_forward.1} parent=11 // pred_check
        %p196 = pneg %p143
      $region30: #{wat_forward.1} parent=11 // pred_check_branch
        %198 = sbr.rel (%p196) target = $region32
      $region31: #{wat_forward.1} parent=11 // pred_region
        _
      $region32: #{wat_forward.1} parent=11 // pred_fallthru
        _
    $region12: #{wat_forward.1} parent=5 // pred_fallthru
      _
    %p199 = scmp.lt.s32.totalorder %s12, 2
    // Predicated region
    $region33: #{wat_forward.1} parent=5 // pred_check
      %p200 = pneg %p199
    $region34: #{wat_forward.1} parent=5 // pred_check_branch
      %202 = sbr.rel (%p200) target = $region36
    $region35: #{wat_forward.1} parent=5 // pred_region
      // Predicated region
      $region37: #{wat_forward.1} parent=35 // pred_check
        %p203 = pneg %p32
      $region38: #{wat_forward.1} parent=35 // pred_check_branch
        %205 = sbr.rel (%p203) target = $region40
      $region39: #{wat_forward.1} parent=35 // pred_region
        %p206 = scmp.lt.s32.totalorder %s12, 1
        %s207 = scalar_select %p206, %s12, 1
        %s208 = smul.addr %s207, 2
        %s209 = smul.addr %s208, 4
        %s210 = scalar_lea.vmem %s0, %s209
      $region40: #{wat_forward.1} parent=35 // pred_fallthru
        _
    $region36: #{wat_forward.1} parent=5 // pred_fallthru
      _
    %p211 = scmp.le.s32.totalorder 1, %s12
    %p212 = scmp.lt.s32.totalorder %s12, 3
    %p213 = pnand %p211, %p212
    %p214 = pneg %p213
    // Predicated region
    $region41: #{wat_forward.1} parent=5 // pred_check
      _
    $region42: #{wat_forward.1} parent=5 // pred_check_branch
      %216 = sbr.rel (%p213) target = $region44
    $region43: #{wat_forward.1} parent=5 // pred_region
      %s217 = ssub.s32 %s12, 1
      %p218 = scmp.lt.s32.totalorder %s17, 1
      %s219 = scalar_select %p218, %s17, 1
      %s220 = smul.addr %s219, 2
      %s221 = smul.addr %s220, 4
      %s222 = scalar_lea.vmem %s0, %s221
      %p223 = pneg %p38
      %p224 = pneg %p35
      %p225 = pneg %p59
      %p226 = pneg %p56
      %p227 = pneg %p80
      %p228 = pneg %p77
      %p229 = pneg %p101
      %p230 = pneg %p98
      %p231 = pneg %p122
      %p232 = pneg %p119
      %p233 = pneg %p143
      %p234 = pneg %p140
      %p235 = pneg %p169
      %p236 = pneg %p166
      %p237 = scmp.lt.s32.totalorder %s17, 1
      %s238 = scalar_select %p237, %s17, 1
      %s239 = smul.addr %s238, 2
      %s240 = smul.addr %s239, 4
      %s241 = scalar_lea.vmem %s6, %s240
      %p242 = scmp.lt.s32.totalorder %s17, 1
      %s243 = scalar_select %p242, %s17, 1
      %s244 = smul.addr %s243, 2
      %s245 = smul.addr %s244, 4
      %s246 = scalar_lea.vmem %s0, %s245
      %p247 = scmp.lt.s32.totalorder %s17, 1
      %s248 = scalar_select %p247, %s17, 1
      %s249 = smul.addr %s248, 2
      %s250 = smul.addr %s249, 4
      %s251 = scalar_lea.vmem %s6, %s250
      %v252 = vld [vmem:[%s246] sm:$0xff]
      %v253 = vld [vmem:[%s1] sm:$0x3]
      %v255 = vlaneseq
      %v256 = vshrl.u32 %v255, 7
      %v257 = vsub.s32 0, %v256
      %v258 = vrot.slane %v253, %v257
      %v259 = vlaneseq
      %v260 = vshrl.u32 %v259, 7
      %v261 = vsub.s32 1, %v260
      %v262 = vrot.slane %v253, %v261
      %v263 = vcombine.low %v258, %v262
      %v265 = vmul.f32 %v252, %v263
      %v267 = vcombine.high %v265, %v265
      %vm269 = vcmask 1043456
      %v270 = vsel %vm269, %v265, 0.0
      %v271 = vsel %vm269, %v267, 0.0
      %v272 = vadd.f32 %v270, %v271
      %273 = vadd.xlane.f32.xlu0 %v272
      %v274 = vpop.xlane.xlu0 %273
      %v275 = vld [vmem:[%s2] sm:$0xf]
      %v276 = vld [vmem:[%s3] sm:$0x1]
      %v278 = vlaneseq
      %v279 = vand.u32 %v278, 127
      %v280 = vlaneseq
      %v281 = vshrl.u32 %v280, 7
      %v282 = vsub.s32 %v279, %v281
      %v283 = vrot.slane %v274, %v282
      %vm284 = vcmask 31744
      %v285 = vsel %vm284, %v283, 0
      %v288 = vsel %vm269, %v275, 0
      %290 = vmatprep.subr.mxu0 0.0
      %v291 = vand.u32 %v288, 4294901760
      %292 = vmatpush1.msra.mxu0 %v291
      %293 = vmatprep.subr.mxu0 0.0
      %294 = vmatpush1.msra.mxu0 0.0
      %295 = vmatprep.subr.mxu0 0.0
      %296 = vmatpush1.msra.mxu0 0.0
      %297 = vmatprep.subr.mxu0 0.0
      %298 = vmatpush1.msra.mxu0 0.0
      %299 = vmatprep.subr.mxu0 0.0
      %300 = vmatpush1.msra.mxu0 0.0
      %301 = vmatprep.subr.mxu0 0.0
      %302 = vmatpush1.msra.mxu0 0.0
      %303 = vmatprep.subr.mxu0 0.0
      %304 = vmatpush1.msra.mxu0 0.0
      %305 = vmatprep.subr.mxu0 0.0
      %306 = vmatpush1.msra.mxu0 0.0
      %307 = vmatprep.subr.mxu0 0.0
      %308 = vmatpush1.msra.mxu0 0.0
      %309 = vmatprep.subr.mxu0 0.0
      %310 = vmatpush1.msra.mxu0 0.0
      %311 = vmatprep.subr.mxu0 0.0
      %312 = vmatpush1.msra.mxu0 0.0
      %313 = vmatprep.subr.mxu0 0.0
      %314 = vmatpush1.msra.mxu0 0.0
      %315 = vmatprep.subr.mxu0 0.0
      %316 = vmatpush1.msra.mxu0 0.0
      %317 = vmatprep.subr.mxu0 0.0
      %318 = vmatpush1.msra.mxu0 0.0
      %319 = vmatprep.subr.mxu0 0.0
      %320 = vmatpush1.msra.mxu0 0.0
      %321 = vmatprep.subr.mxu0 0.0
      %322 = vmatpush1.msra.mxu0 0.0
      %323 = vmatprep.subr.mxu0 0.0
      %324 = vmatpush1.msra.mxu0 0.0
      %325 = vmatprep.subr.mxu0 0.0
      %326 = vmatpush1.msra.mxu0 0.0
      %327 = vmatprep.subr.mxu0 0.0
      %328 = vmatpush1.msra.mxu0 0.0
      %329 = vmatprep.subr.mxu0 0.0
      %330 = vmatpush1.msra.mxu0 0.0
      %331 = vmatprep.subr.mxu0 0.0
      %332 = vmatpush1.msra.mxu0 0.0
      %333 = vmatprep.subr.mxu0 0.0
      %334 = vmatpush1.msra.mxu0 0.0
      %335 = vmatprep.subr.mxu0 0.0
      %336 = vmatpush1.msra.mxu0 0.0
      %337 = vmatprep.subr.mxu0 0.0
      %338 = vmatpush1.msra.mxu0 0.0
      %339 = vmatprep.subr.mxu0 0.0
      %340 = vmatpush1.msra.mxu0 0.0
      %341 = vmatprep.subr.mxu0 0.0
      %342 = vmatpush1.msra.mxu0 0.0
      %343 = vmatprep.subr.mxu0 0.0
      %344 = vmatpush1.msra.mxu0 0.0
      %345 = vmatprep.subr.mxu0 0.0
      %346 = vmatpush1.msra.mxu0 0.0
      %347 = vmatprep.subr.mxu0 0.0
      %348 = vmatpush1.msra.mxu0 0.0
      %349 = vmatprep.subr.mxu0 0.0
      %350 = vmatpush1.msra.mxu0 0.0
      %351 = vmatprep.subr.mxu0 0.0
      %352 = vmatpush1.msra.mxu0 0.0
      %353 = vmatprep.subr.mxu0 0.0
      %354 = vmatpush1.msra.mxu0 0.0
      %355 = vmatprep.mubr.f32.mxu0 0.0
      %v356 = vand.u32 %v285, 4294901760
      %v357 = vsub.f32 %v285, %v356
      %v358 = vand.u32 %v357, 4294901760
      %v359 = vsub.f32 %v357, %v358
      %v360 = vand.u32 %v359, 4294901760
      %361 = vmatmul.mubr.f32.gmra.mrb[0].mxu0 %v360
      %v362 = vpop.f32.mrb[0].mxu0
      %v363 = vadd.f32 %v276, %v362
      %v364 = vpop.f32.mrb[0].mxu0
      %365 = vdwg.mxu0
      %366 = vmatprep.subr.mxu0 0.0
      %v367 = vand.u32 %v288, 4294901760
      %v368 = vsub.f32 %v288, %v367
      %v369 = vand.u32 %v368, 4294901760
      %v370 = vsub.f32 %v368, %v369
      %v371 = vand.u32 %v370, 4294901760
      %372 = vmatpush1.msra.mxu0 %v371
      %373 = vmatprep.subr.mxu0 0.0
      %374 = vmatpush1.msra.mxu0 0.0
      %375 = vmatprep.subr.mxu0 0.0
      %376 = vmatpush1.msra.mxu0 0.0
      %377 = vmatprep.subr.mxu0 0.0
      %378 = vmatpush1.msra.mxu0 0.0
      %379 = vmatprep.subr.mxu0 0.0
      %380 = vmatpush1.msra.mxu0 0.0
      %381 = vmatprep.subr.mxu0 0.0
      %382 = vmatpush1.msra.mxu0 0.0
      %383 = vmatprep.subr.mxu0 0.0
      %384 = vmatpush1.msra.mxu0 0.0
      %385 = vmatprep.subr.mxu0 0.0
      %386 = vmatpush1.msra.mxu0 0.0
      %387 = vmatprep.subr.mxu0 0.0
      %388 = vmatpush1.msra.mxu0 0.0
      %389 = vmatprep.subr.mxu0 0.0
      %390 = vmatpush1.msra.mxu0 0.0
      %391 = vmatprep.subr.mxu0 0.0
      %392 = vmatpush1.msra.mxu0 0.0
      %393 = vmatprep.subr.mxu0 0.0
      %394 = vmatpush1.msra.mxu0 0.0
      %395 = vmatprep.subr.mxu0 0.0
      %396 = vmatpush1.msra.mxu0 0.0
      %397 = vmatprep.subr.mxu0 0.0
      %398 = vmatpush1.msra.mxu0 0.0
      %399 = vmatprep.subr.mxu0 0.0
      %400 = vmatpush1.msra.mxu0 0.0
      %401 = vmatprep.subr.mxu0 0.0
      %402 = vmatpush1.msra.mxu0 0.0
      %403 = vmatprep.subr.mxu0 0.0
      %404 = vmatpush1.msra.mxu0 0.0
      %405 = vmatprep.subr.mxu0 0.0
      %406 = vmatpush1.msra.mxu0 0.0
      %407 = vmatprep.subr.mxu0 0.0
      %408 = vmatpush1.msra.mxu0 0.0
      %409 = vmatprep.subr.mxu0 0.0
      %410 = vmatpush1.msra.mxu0 0.0
      %411 = vmatprep.subr.mxu0 0.0
      %412 = vmatpush1.msra.mxu0 0.0
      %413 = vmatprep.subr.mxu0 0.0
      %414 = vmatpush1.msra.mxu0 0.0
      %415 = vmatprep.subr.mxu0 0.0
      %416 = vmatpush1.msra.mxu0 0.0
      %417 = vmatprep.subr.mxu0 0.0
      %418 = vmatpush1.msra.mxu0 0.0
      %419 = vmatprep.subr.mxu0 0.0
      %420 = vmatpush1.msra.mxu0 0.0
      %421 = vmatprep.subr.mxu0 0.0
      %422 = vmatpush1.msra.mxu0 0.0
      %423 = vmatprep.subr.mxu0 0.0
      %424 = vmatpush1.msra.mxu0 0.0
      %425 = vmatprep.subr.mxu0 0.0
      %426 = vmatpush1.msra.mxu0 0.0
      %427 = vmatprep.subr.mxu0 0.0
      %428 = vmatpush1.msra.mxu0 0.0
      %429 = vmatprep.subr.mxu0 0.0
      %430 = vmatpush1.msra.mxu0 0.0
      %431 = vmatprep.subr.mxu0 0.0
      %432 = vmatpush1.msra.mxu0 0.0
      %433 = vmatprep.subr.mxu0 0.0
      %434 = vmatpush1.msra.mxu0 0.0
      %435 = vmatprep.mubr.f32.mxu0 0.0
      %v436 = vand.u32 %v285, 4294901760
      %437 = vmatmul.mubr.f32.gmra.mrb[0].mxu0 %v436
      %v438 = vpop.f32.mrb[0].mxu0
      %v439 = vadd.f32 %v363, %v438
      %v440 = vpop.f32.mrb[0].mxu0
      %441 = vdwg.mxu0
      %442 = vmatprep.subr.mxu0 0.0
      %v443 = vand.u32 %v288, 4294901760
      %v444 = vsub.f32 %v288, %v443
      %445 = vmatpush1.msra.mxu0 %v444
      %446 = vmatprep.subr.mxu0 0.0
      %447 = vmatpush1.msra.mxu0 0.0
      %448 = vmatprep.subr.mxu0 0.0
      %449 = vmatpush1.msra.mxu0 0.0
      %450 = vmatprep.subr.mxu0 0.0
      %451 = vmatpush1.msra.mxu0 0.0
      %452 = vmatprep.subr.mxu0 0.0
      %453 = vmatpush1.msra.mxu0 0.0
      %454 = vmatprep.subr.mxu0 0.0
      %455 = vmatpush1.msra.mxu0 0.0
      %456 = vmatprep.subr.mxu0 0.0
      %457 = vmatpush1.msra.mxu0 0.0
      %458 = vmatprep.subr.mxu0 0.0
      %459 = vmatpush1.msra.mxu0 0.0
      %460 = vmatprep.subr.mxu0 0.0
      %461 = vmatpush1.msra.mxu0 0.0
      %462 = vmatprep.subr.mxu0 0.0
      %463 = vmatpush1.msra.mxu0 0.0
      %464 = vmatprep.subr.mxu0 0.0
      %465 = vmatpush1.msra.mxu0 0.0
      %466 = vmatprep.subr.mxu0 0.0
      %467 = vmatpush1.msra.mxu0 0.0
      %468 = vmatprep.subr.mxu0 0.0
      %469 = vmatpush1.msra.mxu0 0.0
      %470 = vmatprep.subr.mxu0 0.0
      %471 = vmatpush1.msra.mxu0 0.0
      %472 = vmatprep.subr.mxu0 0.0
      %473 = vmatpush1.msra.mxu0 0.0
      %474 = vmatprep.subr.mxu0 0.0
      %475 = vmatpush1.msra.mxu0 0.0
      %476 = vmatprep.subr.mxu0 0.0
      %477 = vmatpush1.msra.mxu0 0.0
      %478 = vmatprep.subr.mxu0 0.0
      %479 = vmatpush1.msra.mxu0 0.0
      %480 = vmatprep.subr.mxu0 0.0
      %481 = vmatpush1.msra.mxu0 0.0
      %482 = vmatprep.subr.mxu0 0.0
      %483 = vmatpush1.msra.mxu0 0.0
      %484 = vmatprep.subr.mxu0 0.0
      %485 = vmatpush1.msra.mxu0 0.0
      %486 = vmatprep.subr.mxu0 0.0
      %487 = vmatpush1.msra.mxu0 0.0
      %488 = vmatprep.subr.mxu0 0.0
      %489 = vmatpush1.msra.mxu0 0.0
      %490 = vmatprep.subr.mxu0 0.0
      %491 = vmatpush1.msra.mxu0 0.0
      %492 = vmatprep.subr.mxu0 0.0
      %493 = vmatpush1.msra.mxu0 0.0
      %494 = vmatprep.subr.mxu0 0.0
      %495 = vmatpush1.msra.mxu0 0.0
      %496 = vmatprep.subr.mxu0 0.0
      %497 = vmatpush1.msra.mxu0 0.0
      %498 = vmatprep.subr.mxu0 0.0
      %499 = vmatpush1.msra.mxu0 0.0
      %500 = vmatprep.subr.mxu0 0.0
      %501 = vmatpush1.msra.mxu0 0.0
      %502 = vmatprep.subr.mxu0 0.0
      %503 = vmatpush1.msra.mxu0 0.0
      %504 = vmatprep.subr.mxu0 0.0
      %505 = vmatpush1.msra.mxu0 0.0
      %506 = vmatprep.subr.mxu0 0.0
      %507 = vmatpush1.msra.mxu0 0.0
      %508 = vmatprep.mubr.f32.mxu0 0.0
      %v509 = vand.u32 %v285, 4294901760
      %v510 = vsub.f32 %v285, %v509
      %511 = vmatmul.mubr.f32.gmra.mrb[0].mxu0 %v510
      %v512 = vpop.f32.mrb[0].mxu0
      %v513 = vadd.f32 %v439, %v512
      %v514 = vpop.f32.mrb[0].mxu0
      %515 = vdwg.mxu0
      %516 = vmatprep.subr.mxu0 0.0
      %v517 = vand.u32 %v288, 4294901760
      %518 = vmatpush1.msra.mxu0 %v517
      %519 = vmatprep.subr.mxu0 0.0
      %520 = vmatpush1.msra.mxu0 0.0
      %521 = vmatprep.subr.mxu0 0.0
      %522 = vmatpush1.msra.mxu0 0.0
      %523 = vmatprep.subr.mxu0 0.0
      %524 = vmatpush1.msra.mxu0 0.0
      %525 = vmatprep.subr.mxu0 0.0
      %526 = vmatpush1.msra.mxu0 0.0
      %527 = vmatprep.subr.mxu0 0.0
      %528 = vmatpush1.msra.mxu0 0.0
      %529 = vmatprep.subr.mxu0 0.0
      %530 = vmatpush1.msra.mxu0 0.0
      %531 = vmatprep.subr.mxu0 0.0
      %532 = vmatpush1.msra.mxu0 0.0
      %533 = vmatprep.subr.mxu0 0.0
      %534 = vmatpush1.msra.mxu0 0.0
      %535 = vmatprep.subr.mxu0 0.0
      %536 = vmatpush1.msra.mxu0 0.0
      %537 = vmatprep.subr.mxu0 0.0
      %538 = vmatpush1.msra.mxu0 0.0
      %539 = vmatprep.subr.mxu0 0.0
      %540 = vmatpush1.msra.mxu0 0.0
      %541 = vmatprep.subr.mxu0 0.0
      %542 = vmatpush1.msra.mxu0 0.0
      %543 = vmatprep.subr.mxu0 0.0
      %544 = vmatpush1.msra.mxu0 0.0
      %545 = vmatprep.subr.mxu0 0.0
      %546 = vmatpush1.msra.mxu0 0.0
      %547 = vmatprep.subr.mxu0 0.0
      %548 = vmatpush1.msra.mxu0 0.0
      %549 = vmatprep.subr.mxu0 0.0
      %550 = vmatpush1.msra.mxu0 0.0
      %551 = vmatprep.subr.mxu0 0.0
      %552 = vmatpush1.msra.mxu0 0.0
      %553 = vmatprep.subr.mxu0 0.0
      %554 = vmatpush1.msra.mxu0 0.0
      %555 = vmatprep.subr.mxu0 0.0
      %556 = vmatpush1.msra.mxu0 0.0
      %557 = vmatprep.subr.mxu0 0.0
      %558 = vmatpush1.msra.mxu0 0.0
      %559 = vmatprep.subr.mxu0 0.0
      %560 = vmatpush1.msra.mxu0 0.0
      %561 = vmatprep.subr.mxu0 0.0
      %562 = vmatpush1.msra.mxu0 0.0
      %563 = vmatprep.subr.mxu0 0.0
      %564 = vmatpush1.msra.mxu0 0.0
      %565 = vmatprep.subr.mxu0 0.0
      %566 = vmatpush1.msra.mxu0 0.0
      %567 = vmatprep.subr.mxu0 0.0
      %568 = vmatpush1.msra.mxu0 0.0
      %569 = vmatprep.subr.mxu0 0.0
      %570 = vmatpush1.msra.mxu0 0.0
      %571 = vmatprep.subr.mxu0 0.0
      %572 = vmatpush1.msra.mxu0 0.0
      %573 = vmatprep.subr.mxu0 0.0
      %574 = vmatpush1.msra.mxu0 0.0
      %575 = vmatprep.subr.mxu0 0.0
      %576 = vmatpush1.msra.mxu0 0.0
      %577 = vmatprep.subr.mxu0 0.0
      %578 = vmatpush1.msra.mxu0 0.0
      %579 = vmatprep.subr.mxu0 0.0
      %580 = vmatpush1.msra.mxu0 0.0
      %581 = vmatprep.mubr.f32.mxu0 0.0
      %v582 = vand.u32 %v285, 4294901760
      %v583 = vsub.f32 %v285, %v582
      %v584 = vand.u32 %v583, 4294901760
      %585 = vmatmul.mubr.f32.gmra.mrb[0].mxu0 %v584
      %v586 = vpop.f32.mrb[0].mxu0
      %v587 = vadd.f32 %v513, %v586
      %v588 = vpop.f32.mrb[0].mxu0
      %589 = vdwg.mxu0
      %590 = vmatprep.subr.mxu0 0.0
      %v591 = vand.u32 %v288, 4294901760
      %v592 = vsub.f32 %v288, %v591
      %v593 = vand.u32 %v592, 4294901760
      %594 = vmatpush1.msra.mxu0 %v593
      %595 = vmatprep.subr.mxu0 0.0
      %596 = vmatpush1.msra.mxu0 0.0
      %597 = vmatprep.subr.mxu0 0.0
      %598 = vmatpush1.msra.mxu0 0.0
      %599 = vmatprep.subr.mxu0 0.0
      %600 = vmatpush1.msra.mxu0 0.0
      %601 = vmatprep.subr.mxu0 0.0
      %602 = vmatpush1.msra.mxu0 0.0
      %603 = vmatprep.subr.mxu0 0.0
      %604 = vmatpush1.msra.mxu0 0.0
      %605 = vmatprep.subr.mxu0 0.0
      %606 = vmatpush1.msra.mxu0 0.0
      %607 = vmatprep.subr.mxu0 0.0
      %608 = vmatpush1.msra.mxu0 0.0
      %609 = vmatprep.subr.mxu0 0.0
      %610 = vmatpush1.msra.mxu0 0.0
      %611 = vmatprep.subr.mxu0 0.0
      %612 = vmatpush1.msra.mxu0 0.0
      %613 = vmatprep.subr.mxu0 0.0
      %614 = vmatpush1.msra.mxu0 0.0
      %615 = vmatprep.subr.mxu0 0.0
      %616 = vmatpush1.msra.mxu0 0.0
      %617 = vmatprep.subr.mxu0 0.0
      %618 = vmatpush1.msra.mxu0 0.0
      %619 = vmatprep.subr.mxu0 0.0
      %620 = vmatpush1.msra.mxu0 0.0
      %621 = vmatprep.subr.mxu0 0.0
      %622 = vmatpush1.msra.mxu0 0.0
      %623 = vmatprep.subr.mxu0 0.0
      %624 = vmatpush1.msra.mxu0 0.0
      %625 = vmatprep.subr.mxu0 0.0
      %626 = vmatpush1.msra.mxu0 0.0
      %627 = vmatprep.subr.mxu0 0.0
      %628 = vmatpush1.msra.mxu0 0.0
      %629 = vmatprep.subr.mxu0 0.0
      %630 = vmatpush1.msra.mxu0 0.0
      %631 = vmatprep.subr.mxu0 0.0
      %632 = vmatpush1.msra.mxu0 0.0
      %633 = vmatprep.subr.mxu0 0.0
      %634 = vmatpush1.msra.mxu0 0.0
      %635 = vmatprep.subr.mxu0 0.0
      %636 = vmatpush1.msra.mxu0 0.0
      %637 = vmatprep.subr.mxu0 0.0
      %638 = vmatpush1.msra.mxu0 0.0
      %639 = vmatprep.subr.mxu0 0.0
      %640 = vmatpush1.msra.mxu0 0.0
      %641 = vmatprep.subr.mxu0 0.0
      %642 = vmatpush1.msra.mxu0 0.0
      %643 = vmatprep.subr.mxu0 0.0
      %644 = vmatpush1.msra.mxu0 0.0
      %645 = vmatprep.subr.mxu0 0.0
      %646 = vmatpush1.msra.mxu0 0.0
      %647 = vmatprep.subr.mxu0 0.0
      %648 = vmatpush1.msra.mxu0 0.0
      %649 = vmatprep.subr.mxu0 0.0
      %650 = vmatpush1.msra.mxu0 0.0
      %651 = vmatprep.subr.mxu0 0.0
      %652 = vmatpush1.msra.mxu0 0.0
      %653 = vmatprep.subr.mxu0 0.0
      %654 = vmatpush1.msra.mxu0 0.0
      %655 = vmatprep.subr.mxu0 0.0
      %656 = vmatpush1.msra.mxu0 0.0
      %657 = vmatprep.mubr.f32.mxu0 0.0
      %v658 = vand.u32 %v285, 4294901760
      %659 = vmatmul.mubr.f32.gmra.mrb[0].mxu0 %v658
      %v660 = vpop.f32.mrb[0].mxu0
      %v661 = vadd.f32 %v587, %v660
      %v662 = vpop.f32.mrb[0].mxu0
      %663 = vdwg.mxu0
      %664 = vmatprep.subr.mxu0 0.0
      %v665 = vand.u32 %v288, 4294901760
      %666 = vmatpush1.msra.mxu0 %v665
      %667 = vmatprep.subr.mxu0 0.0
      %668 = vmatpush1.msra.mxu0 0.0
      %669 = vmatprep.subr.mxu0 0.0
      %670 = vmatpush1.msra.mxu0 0.0
      %671 = vmatprep.subr.mxu0 0.0
      %672 = vmatpush1.msra.mxu0 0.0
      %673 = vmatprep.subr.mxu0 0.0
      %674 = vmatpush1.msra.mxu0 0.0
      %675 = vmatprep.subr.mxu0 0.0
      %676 = vmatpush1.msra.mxu0 0.0
      %677 = vmatprep.subr.mxu0 0.0
      %678 = vmatpush1.msra.mxu0 0.0
      %679 = vmatprep.subr.mxu0 0.0
      %680 = vmatpush1.msra.mxu0 0.0
      %681 = vmatprep.subr.mxu0 0.0
      %682 = vmatpush1.msra.mxu0 0.0
      %683 = vmatprep.subr.mxu0 0.0
      %684 = vmatpush1.msra.mxu0 0.0
      %685 = vmatprep.subr.mxu0 0.0
      %686 = vmatpush1.msra.mxu0 0.0
      %687 = vmatprep.subr.mxu0 0.0
      %688 = vmatpush1.msra.mxu0 0.0
      %689 = vmatprep.subr.mxu0 0.0
      %690 = vmatpush1.msra.mxu0 0.0
      %691 = vmatprep.subr.mxu0 0.0
      %692 = vmatpush1.msra.mxu0 0.0
      %693 = vmatprep.subr.mxu0 0.0
      %694 = vmatpush1.msra.mxu0 0.0
      %695 = vmatprep.subr.mxu0 0.0
      %696 = vmatpush1.msra.mxu0 0.0
      %697 = vmatprep.subr.mxu0 0.0
      %698 = vmatpush1.msra.mxu0 0.0
      %699 = vmatprep.subr.mxu0 0.0
      %700 = vmatpush1.msra.mxu0 0.0
      %701 = vmatprep.subr.mxu0 0.0
      %702 = vmatpush1.msra.mxu0 0.0
      %703 = vmatprep.subr.mxu0 0.0
      %704 = vmatpush1.msra.mxu0 0.0
      %705 = vmatprep.subr.mxu0 0.0
      %706 = vmatpush1.msra.mxu0 0.0
      %707 = vmatprep.subr.mxu0 0.0
      %708 = vmatpush1.msra.mxu0 0.0
      %709 = vmatprep.subr.mxu0 0.0
      %710 = vmatpush1.msra.mxu0 0.0
      %711 = vmatprep.subr.mxu0 0.0
      %712 = vmatpush1.msra.mxu0 0.0
      %713 = vmatprep.subr.mxu0 0.0
      %714 = vmatpush1.msra.mxu0 0.0
      %715 = vmatprep.subr.mxu0 0.0
      %716 = vmatpush1.msra.mxu0 0.0
      %717 = vmatprep.subr.mxu0 0.0
      %718 = vmatpush1.msra.mxu0 0.0
      %719 = vmatprep.subr.mxu0 0.0
      %720 = vmatpush1.msra.mxu0 0.0
      %721 = vmatprep.subr.mxu0 0.0
      %722 = vmatpush1.msra.mxu0 0.0
      %723 = vmatprep.subr.mxu0 0.0
      %724 = vmatpush1.msra.mxu0 0.0
      %725 = vmatprep.subr.mxu0 0.0
      %726 = vmatpush1.msra.mxu0 0.0
      %727 = vmatprep.subr.mxu0 0.0
      %728 = vmatpush1.msra.mxu0 0.0
      %729 = vmatprep.mubr.f32.mxu0 0.0
      %v730 = vand.u32 %v285, 4294901760
      %731 = vmatmul.mubr.f32.gmra.mrb[0].mxu0 %v730
      %v732 = vpop.f32.mrb[0].mxu0
      %v733 = vadd.f32 %v661, %v732
      %v734 = vpop.f32.mrb[0].mxu0
      %735 = vdwg.mxu0
      %v736 = vmax.f32 %v733, 0.0
      %v737 = vld [vmem:[%s4] sm:$0x3]
      %v738 = vld [vmem:[%s5] sm:$0x1]
      %vm739 = vcmask 15360
      %v741 = vsel %vm739, %v736, 0
      %vm743 = vcmask 1041408
      %v745 = vsel %vm743, %v737, 0
      %747 = vmatprep.subr.mxu0 0.0
      %v748 = vand.u32 %v745, 4294901760
      %749 = vmatpush1.msra.mxu0 %v748
      %750 = vmatprep.subr.mxu0 0.0
      %751 = vmatpush1.msra.mxu0 0.0
      %752 = vmatprep.subr.mxu0 0.0
      %753 = vmatpush1.msra.mxu0 0.0
      %754 = vmatprep.subr.mxu0 0.0
      %755 = vmatpush1.msra.mxu0 0.0
      %756 = vmatprep.subr.mxu0 0.0
      %757 = vmatpush1.msra.mxu0 0.0
      %758 = vmatprep.subr.mxu0 0.0
      %759 = vmatpush1.msra.mxu0 0.0
      %760 = vmatprep.subr.mxu0 0.0
      %761 = vmatpush1.msra.mxu0 0.0
      %762 = vmatprep.subr.mxu0 0.0
      %763 = vmatpush1.msra.mxu0 0.0
      %764 = vmatprep.subr.mxu0 0.0
      %765 = vmatpush1.msra.mxu0 0.0
      %766 = vmatprep.subr.mxu0 0.0
      %767 = vmatpush1.msra.mxu0 0.0
      %768 = vmatprep.subr.mxu0 0.0
      %769 = vmatpush1.msra.mxu0 0.0
      %770 = vmatprep.subr.mxu0 0.0
      %771 = vmatpush1.msra.mxu0 0.0
      %772 = vmatprep.subr.mxu0 0.0
      %773 = vmatpush1.msra.mxu0 0.0
      %774 = vmatprep.subr.mxu0 0.0
      %775 = vmatpush1.msra.mxu0 0.0
      %776 = vmatprep.subr.mxu0 0.0
      %777 = vmatpush1.msra.mxu0 0.0
      %778 = vmatprep.subr.mxu0 0.0
      %779 = vmatpush1.msra.mxu0 0.0
      %780 = vmatprep.subr.mxu0 0.0
      %781 = vmatpush1.msra.mxu0 0.0
      %782 = vmatprep.subr.mxu0 0.0
      %783 = vmatpush1.msra.mxu0 0.0
      %784 = vmatprep.subr.mxu0 0.0
      %785 = vmatpush1.msra.mxu0 0.0
      %786 = vmatprep.subr.mxu0 0.0
      %787 = vmatpush1.msra.mxu0 0.0
      %788 = vmatprep.subr.mxu0 0.0
      %789 = vmatpush1.msra.mxu0 0.0
      %790 = vmatprep.subr.mxu0 0.0
      %791 = vmatpush1.msra.mxu0 0.0
      %792 = vmatprep.subr.mxu0 0.0
      %793 = vmatpush1.msra.mxu0 0.0
      %794 = vmatprep.subr.mxu0 0.0
      %795 = vmatpush1.msra.mxu0 0.0
      %796 = vmatprep.subr.mxu0 0.0
      %797 = vmatpush1.msra.mxu0 0.0
      %798 = vmatprep.subr.mxu0 0.0
      %799 = vmatpush1.msra.mxu0 0.0
      %800 = vmatprep.subr.mxu0 0.0
      %801 = vmatpush1.msra.mxu0 0.0
      %802 = vmatprep.subr.mxu0 0.0
      %803 = vmatpush1.msra.mxu0 0.0
      %804 = vmatprep.subr.mxu0 0.0
      %805 = vmatpush1.msra.mxu0 0.0
      %806 = vmatprep.subr.mxu0 0.0
      %807 = vmatpush1.msra.mxu0 0.0
      %808 = vmatprep.subr.mxu0 0.0
      %809 = vmatpush1.msra.mxu0 0.0
      %810 = vmatprep.subr.mxu0 0.0
      %811 = vmatpush1.msra.mxu0 0.0
      %812 = vmatprep.mubr.f32.mxu0 0.0
      %v813 = vand.u32 %v741, 4294901760
      %v814 = vsub.f32 %v741, %v813
      %v815 = vand.u32 %v814, 4294901760
      %v816 = vsub.f32 %v814, %v815
      %v817 = vand.u32 %v816, 4294901760
      %818 = vmatmul.mubr.f32.gmra.mrb[0].mxu0 %v817
      %v819 = vpop.f32.mrb[0].mxu0
      %v820 = vadd.f32 %v738, %v819
      %v821 = vpop.f32.mrb[0].mxu0
      %822 = vdwg.mxu0
      %823 = vmatprep.subr.mxu0 0.0
      %v824 = vand.u32 %v745, 4294901760
      %v825 = vsub.f32 %v745, %v824
      %v826 = vand.u32 %v825, 4294901760
      %v827 = vsub.f32 %v825, %v826
      %v828 = vand.u32 %v827, 4294901760
      %829 = vmatpush1.msra.mxu0 %v828
      %830 = vmatprep.subr.mxu0 0.0
      %831 = vmatpush1.msra.mxu0 0.0
      %832 = vmatprep.subr.mxu0 0.0
      %833 = vmatpush1.msra.mxu0 0.0
      %834 = vmatprep.subr.mxu0 0.0
      %835 = vmatpush1.msra.mxu0 0.0
      %836 = vmatprep.subr.mxu0 0.0
      %837 = vmatpush1.msra.mxu0 0.0
      %838 = vmatprep.subr.mxu0 0.0
      %839 = vmatpush1.msra.mxu0 0.0
      %840 = vmatprep.subr.mxu0 0.0
      %841 = vmatpush1.msra.mxu0 0.0
      %842 = vmatprep.subr.mxu0 0.0
      %843 = vmatpush1.msra.mxu0 0.0
      %844 = vmatprep.subr.mxu0 0.0
      %845 = vmatpush1.msra.mxu0 0.0
      %846 = vmatprep.subr.mxu0 0.0
      %847 = vmatpush1.msra.mxu0 0.0
      %848 = vmatprep.subr.mxu0 0.0
      %849 = vmatpush1.msra.mxu0 0.0
      %850 = vmatprep.subr.mxu0 0.0
      %851 = vmatpush1.msra.mxu0 0.0
      %852 = vmatprep.subr.mxu0 0.0
      %853 = vmatpush1.msra.mxu0 0.0
      %854 = vmatprep.subr.mxu0 0.0
      %855 = vmatpush1.msra.mxu0 0.0
      %856 = vmatprep.subr.mxu0 0.0
      %857 = vmatpush1.msra.mxu0 0.0
      %858 = vmatprep.subr.mxu0 0.0
      %859 = vmatpush1.msra.mxu0 0.0
      %860 = vmatprep.subr.mxu0 0.0
      %861 = vmatpush1.msra.mxu0 0.0
      %862 = vmatprep.subr.mxu0 0.0
      %863 = vmatpush1.msra.mxu0 0.0
      %864 = vmatprep.subr.mxu0 0.0
      %865 = vmatpush1.msra.mxu0 0.0
      %866 = vmatprep.subr.mxu0 0.0
      %867 = vmatpush1.msra.mxu0 0.0
      %868 = vmatprep.subr.mxu0 0.0
      %869 = vmatpush1.msra.mxu0 0.0
      %870 = vmatprep.subr.mxu0 0.0
      %871 = vmatpush1.msra.mxu0 0.0
      %872 = vmatprep.subr.mxu0 0.0
      %873 = vmatpush1.msra.mxu0 0.0
      %874 = vmatprep.subr.mxu0 0.0
      %875 = vmatpush1.msra.mxu0 0.0
      %876 = vmatprep.subr.mxu0 0.0
      %877 = vmatpush1.msra.mxu0 0.0
      %878 = vmatprep.subr.mxu0 0.0
      %879 = vmatpush1.msra.mxu0 0.0
      %880 = vmatprep.subr.mxu0 0.0
      %881 = vmatpush1.msra.mxu0 0.0
      %882 = vmatprep.subr.mxu0 0.0
      %883 = vmatpush1.msra.mxu0 0.0
      %884 = vmatprep.subr.mxu0 0.0
      %885 = vmatpush1.msra.mxu0 0.0
      %886 = vmatprep.subr.mxu0 0.0
      %887 = vmatpush1.msra.mxu0 0.0
      %888 = vmatprep.subr.mxu0 0.0
      %889 = vmatpush1.msra.mxu0 0.0
      %890 = vmatprep.subr.mxu0 0.0
      %891 = vmatpush1.msra.mxu0 0.0
      %892 = vmatprep.mubr.f32.mxu0 0.0
      %v893 = vand.u32 %v741, 4294901760
      %894 = vmatmul.mubr.f32.gmra.mrb[0].mxu0 %v893
      %v895 = vpop.f32.mrb[0].mxu0
      %v896 = vadd.f32 %v820, %v895
      %v897 = vpop.f32.mrb[0].mxu0
      %898 = vdwg.mxu0
      %899 = vmatprep.subr.mxu0 0.0
      %v900 = vand.u32 %v745, 4294901760
      %v901 = vsub.f32 %v745, %v900
      %902 = vmatpush1.msra.mxu0 %v901
      %903 = vmatprep.subr.mxu0 0.0
      %904 = vmatpush1.msra.mxu0 0.0
      %905 = vmatprep.subr.mxu0 0.0
      %906 = vmatpush1.msra.mxu0 0.0
      %907 = vmatprep.subr.mxu0 0.0
      %908 = vmatpush1.msra.mxu0 0.0
      %909 = vmatprep.subr.mxu0 0.0
      %910 = vmatpush1.msra.mxu0 0.0
      %911 = vmatprep.subr.mxu0 0.0
      %912 = vmatpush1.msra.mxu0 0.0
      %913 = vmatprep.subr.mxu0 0.0
      %914 = vmatpush1.msra.mxu0 0.0
      %915 = vmatprep.subr.mxu0 0.0
      %916 = vmatpush1.msra.mxu0 0.0
      %917 = vmatprep.subr.mxu0 0.0
      %918 = vmatpush1.msra.mxu0 0.0
      %919 = vmatprep.subr.mxu0 0.0
      %920 = vmatpush1.msra.mxu0 0.0
      %921 = vmatprep.subr.mxu0 0.0
      %922 = vmatpush1.msra.mxu0 0.0
      %923 = vmatprep.subr.mxu0 0.0
      %924 = vmatpush1.msra.mxu0 0.0
      %925 = vmatprep.subr.mxu0 0.0
      %926 = vmatpush1.msra.mxu0 0.0
      %927 = vmatprep.subr.mxu0 0.0
      %928 = vmatpush1.msra.mxu0 0.0
      %929 = vmatprep.subr.mxu0 0.0
      %930 = vmatpush1.msra.mxu0 0.0
      %931 = vmatprep.subr.mxu0 0.0
      %932 = vmatpush1.msra.mxu0 0.0
      %933 = vmatprep.subr.mxu0 0.0
      %934 = vmatpush1.msra.mxu0 0.0
      %935 = vmatprep.subr.mxu0 0.0
      %936 = vmatpush1.msra.mxu0 0.0
      %937 = vmatprep.subr.mxu0 0.0
      %938 = vmatpush1.msra.mxu0 0.0
      %939 = vmatprep.subr.mxu0 0.0
      %940 = vmatpush1.msra.mxu0 0.0
      %941 = vmatprep.subr.mxu0 0.0
      %942 = vmatpush1.msra.mxu0 0.0
      %943 = vmatprep.subr.mxu0 0.0
      %944 = vmatpush1.msra.mxu0 0.0
      %945 = vmatprep.subr.mxu0 0.0
      %946 = vmatpush1.msra.mxu0 0.0
      %947 = vmatprep.subr.mxu0 0.0
      %948 = vmatpush1.msra.mxu0 0.0
      %949 = vmatprep.subr.mxu0 0.0
      %950 = vmatpush1.msra.mxu0 0.0
      %951 = vmatprep.subr.mxu0 0.0
      %952 = vmatpush1.msra.mxu0 0.0
      %953 = vmatprep.subr.mxu0 0.0
      %954 = vmatpush1.msra.mxu0 0.0
      %955 = vmatprep.subr.mxu0 0.0
      %956 = vmatpush1.msra.mxu0 0.0
      %957 = vmatprep.subr.mxu0 0.0
      %958 = vmatpush1.msra.mxu0 0.0
      %959 = vmatprep.subr.mxu0 0.0
      %960 = vmatpush1.msra.mxu0 0.0
      %961 = vmatprep.subr.mxu0 0.0
      %962 = vmatpush1.msra.mxu0 0.0
      %963 = vmatprep.subr.mxu0 0.0
      %964 = vmatpush1.msra.mxu0 0.0
      %965 = vmatprep.mubr.f32.mxu0 0.0
      %v966 = vand.u32 %v741, 4294901760
      %v967 = vsub.f32 %v741, %v966
      %968 = vmatmul.mubr.f32.gmra.mrb[0].mxu0 %v967
      %v969 = vpop.f32.mrb[0].mxu0
      %v970 = vadd.f32 %v896, %v969
      %v971 = vpop.f32.mrb[0].mxu0
      %972 = vdwg.mxu0
      %973 = vmatprep.subr.mxu0 0.0
      %v974 = vand.u32 %v745, 4294901760
      %975 = vmatpush1.msra.mxu0 %v974
      %976 = vmatprep.subr.mxu0 0.0
      %977 = vmatpush1.msra.mxu0 0.0
      %978 = vmatprep.subr.mxu0 0.0
      %979 = vmatpush1.msra.mxu0 0.0
      %980 = vmatprep.subr.mxu0 0.0
      %981 = vmatpush1.msra.mxu0 0.0
      %982 = vmatprep.subr.mxu0 0.0
      %983 = vmatpush1.msra.mxu0 0.0
      %984 = vmatprep.subr.mxu0 0.0
      %985 = vmatpush1.msra.mxu0 0.0
      %986 = vmatprep.subr.mxu0 0.0
      %987 = vmatpush1.msra.mxu0 0.0
      %988 = vmatprep.subr.mxu0 0.0
      %989 = vmatpush1.msra.mxu0 0.0
      %990 = vmatprep.subr.mxu0 0.0
      %991 = vmatpush1.msra.mxu0 0.0
      %992 = vmatprep.subr.mxu0 0.0
      %993 = vmatpush1.msra.mxu0 0.0
      %994 = vmatprep.subr.mxu0 0.0
      %995 = vmatpush1.msra.mxu0 0.0
      %996 = vmatprep.subr.mxu0 0.0
      %997 = vmatpush1.msra.mxu0 0.0
      %998 = vmatprep.subr.mxu0 0.0
      %999 = vmatpush1.msra.mxu0 0.0
      %1000 = vmatprep.subr.mxu0 0.0
      %1001 = vmatpush1.msra.mxu0 0.0
      %1002 = vmatprep.subr.mxu0 0.0
      %1003 = vmatpush1.msra.mxu0 0.0
      %1004 = vmatprep.subr.mxu0 0.0
      %1005 = vmatpush1.msra.mxu0 0.0
      %1006 = vmatprep.subr.mxu0 0.0
      %1007 = vmatpush1.msra.mxu0 0.0
      %1008 = vmatprep.subr.mxu0 0.0
      %1009 = vmatpush1.msra.mxu0 0.0
      %1010 = vmatprep.subr.mxu0 0.0
      %1011 = vmatpush1.msra.mxu0 0.0
      %1012 = vmatprep.subr.mxu0 0.0
      %1013 = vmatpush1.msra.mxu0 0.0
      %1014 = vmatprep.subr.mxu0 0.0
      %1015 = vmatpush1.msra.mxu0 0.0
      %1016 = vmatprep.subr.mxu0 0.0
      %1017 = vmatpush1.msra.mxu0 0.0
      %1018 = vmatprep.subr.mxu0 0.0
      %1019 = vmatpush1.msra.mxu0 0.0
      %1020 = vmatprep.subr.mxu0 0.0
      %1021 = vmatpush1.msra.mxu0 0.0
      %1022 = vmatprep.subr.mxu0 0.0
      %1023 = vmatpush1.msra.mxu0 0.0
      %1024 = vmatprep.subr.mxu0 0.0
      %1025 = vmatpush1.msra.mxu0 0.0
      %1026 = vmatprep.subr.mxu0 0.0
      %1027 = vmatpush1.msra.mxu0 0.0
      %1028 = vmatprep.subr.mxu0 0.0
      %1029 = vmatpush1.msra.mxu0 0.0
      %1030 = vmatprep.subr.mxu0 0.0
      %1031 = vmatpush1.msra.mxu0 0.0
      %1032 = vmatprep.subr.mxu0 0.0
      %1033 = vmatpush1.msra.mxu0 0.0
      %1034 = vmatprep.subr.mxu0 0.0
      %1035 = vmatpush1.msra.mxu0 0.0
      %1036 = vmatprep.subr.mxu0 0.0
      %1037 = vmatpush1.msra.mxu0 0.0
      %1038 = vmatprep.mubr.f32.mxu0 0.0
      %v1039 = vand.u32 %v741, 4294901760
      %v1040 = vsub.f32 %v741, %v1039
      %v1041 = vand.u32 %v1040, 4294901760
      %1042 = vmatmul.mubr.f32.gmra.mrb[0].mxu0 %v1041
      %v1043 = vpop.f32.mrb[0].mxu0
      %v1044 = vadd.f32 %v970, %v1043
      %v1045 = vpop.f32.mrb[0].mxu0
      %1046 = vdwg.mxu0
      %1047 = vmatprep.subr.mxu0 0.0
      %v1048 = vand.u32 %v745, 4294901760
      %v1049 = vsub.f32 %v745, %v1048
      %v1050 = vand.u32 %v1049, 4294901760
      %1051 = vmatpush1.msra.mxu0 %v1050
      %1052 = vmatprep.subr.mxu0 0.0
      %1053 = vmatpush1.msra.mxu0 0.0
      %1054 = vmatprep.subr.mxu0 0.0
      %1055 = vmatpush1.msra.mxu0 0.0
      %1056 = vmatprep.subr.mxu0 0.0
      %1057 = vmatpush1.msra.mxu0 0.0
      %1058 = vmatprep.subr.mxu0 0.0
      %1059 = vmatpush1.msra.mxu0 0.0
      %1060 = vmatprep.subr.mxu0 0.0
      %1061 = vmatpush1.msra.mxu0 0.0
      %1062 = vmatprep.subr.mxu0 0.0
      %1063 = vmatpush1.msra.mxu0 0.0
      %1064 = vmatprep.subr.mxu0 0.0
      %1065 = vmatpush1.msra.mxu0 0.0
      %1066 = vmatprep.subr.mxu0 0.0
      %1067 = vmatpush1.msra.mxu0 0.0
      %1068 = vmatprep.subr.mxu0 0.0
      %1069 = vmatpush1.msra.mxu0 0.0
      %1070 = vmatprep.subr.mxu0 0.0
      %1071 = vmatpush1.msra.mxu0 0.0
      %1072 = vmatprep.subr.mxu0 0.0
      %1073 = vmatpush1.msra.mxu0 0.0
      %1074 = vmatprep.subr.mxu0 0.0
      %1075 = vmatpush1.msra.mxu0 0.0
      %1076 = vmatprep.subr.mxu0 0.0
      %1077 = vmatpush1.msra.mxu0 0.0
      %1078 = vmatprep.subr.mxu0 0.0
      %1079 = vmatpush1.msra.mxu0 0.0
      %1080 = vmatprep.subr.mxu0 0.0
      %1081 = vmatpush1.msra.mxu0 0.0
      %1082 = vmatprep.subr.mxu0 0.0
      %1083 = vmatpush1.msra.mxu0 0.0
      %1084 = vmatprep.subr.mxu0 0.0
      %1085 = vmatpush1.msra.mxu0 0.0
      %1086 = vmatprep.subr.mxu0 0.0
      %1087 = vmatpush1.msra.mxu0 0.0
      %1088 = vmatprep.subr.mxu0 0.0
      %1089 = vmatpush1.msra.mxu0 0.0
      %1090 = vmatprep.subr.mxu0 0.0
      %1091 = vmatpush1.msra.mxu0 0.0
      %1092 = vmatprep.subr.mxu0 0.0
      %1093 = vmatpush1.msra.mxu0 0.0
      %1094 = vmatprep.subr.mxu0 0.0
      %1095 = vmatpush1.msra.mxu0 0.0
      %1096 = vmatprep.subr.mxu0 0.0
      %1097 = vmatpush1.msra.mxu0 0.0
      %1098 = vmatprep.subr.mxu0 0.0
      %1099 = vmatpush1.msra.mxu0 0.0
      %1100 = vmatprep.subr.mxu0 0.0
      %1101 = vmatpush1.msra.mxu0 0.0
      %1102 = vmatprep.subr.mxu0 0.0
      %1103 = vmatpush1.msra.mxu0 0.0
      %1104 = vmatprep.subr.mxu0 0.0
      %1105 = vmatpush1.msra.mxu0 0.0
      %1106 = vmatprep.subr.mxu0 0.0
      %1107 = vmatpush1.msra.mxu0 0.0
      %1108 = vmatprep.subr.mxu0 0.0
      %1109 = vmatpush1.msra.mxu0 0.0
      %1110 = vmatprep.subr.mxu0 0.0
      %1111 = vmatpush1.msra.mxu0 0.0
      %1112 = vmatprep.subr.mxu0 0.0
      %1113 = vmatpush1.msra.mxu0 0.0
      %1114 = vmatprep.mubr.f32.mxu0 0.0
      %v1115 = vand.u32 %v741, 4294901760
      %1116 = vmatmul.mubr.f32.gmra.mrb[0].mxu0 %v1115
      %v1117 = vpop.f32.mrb[0].mxu0
      %v1118 = vadd.f32 %v1044, %v1117
      %v1119 = vpop.f32.mrb[0].mxu0
      %1120 = vdwg.mxu0
      %1121 = vmatprep.subr.mxu0 0.0
      %v1122 = vand.u32 %v745, 4294901760
      %1123 = vmatpush1.msra.mxu0 %v1122
      %1124 = vmatprep.subr.mxu0 0.0
      %1125 = vmatpush1.msra.mxu0 0.0
      %1126 = vmatprep.subr.mxu0 0.0
      %1127 = vmatpush1.msra.mxu0 0.0
      %1128 = vmatprep.subr.mxu0 0.0
      %1129 = vmatpush1.msra.mxu0 0.0
      %1130 = vmatprep.subr.mxu0 0.0
      %1131 = vmatpush1.msra.mxu0 0.0
      %1132 = vmatprep.subr.mxu0 0.0
      %1133 = vmatpush1.msra.mxu0 0.0
      %1134 = vmatprep.subr.mxu0 0.0
      %1135 = vmatpush1.msra.mxu0 0.0
      %1136 = vmatprep.subr.mxu0 0.0
      %1137 = vmatpush1.msra.mxu0 0.0
      %1138 = vmatprep.subr.mxu0 0.0
      %1139 = vmatpush1.msra.mxu0 0.0
      %1140 = vmatprep.subr.mxu0 0.0
      %1141 = vmatpush1.msra.mxu0 0.0
      %1142 = vmatprep.subr.mxu0 0.0
      %1143 = vmatpush1.msra.mxu0 0.0
      %1144 = vmatprep.subr.mxu0 0.0
      %1145 = vmatpush1.msra.mxu0 0.0
      %1146 = vmatprep.subr.mxu0 0.0
      %1147 = vmatpush1.msra.mxu0 0.0
      %1148 = vmatprep.subr.mxu0 0.0
      %1149 = vmatpush1.msra.mxu0 0.0
      %1150 = vmatprep.subr.mxu0 0.0
      %1151 = vmatpush1.msra.mxu0 0.0
      %1152 = vmatprep.subr.mxu0 0.0
      %1153 = vmatpush1.msra.mxu0 0.0
      %1154 = vmatprep.subr.mxu0 0.0
      %1155 = vmatpush1.msra.mxu0 0.0
      %1156 = vmatprep.subr.mxu0 0.0
      %1157 = vmatpush1.msra.mxu0 0.0
      %1158 = vmatprep.subr.mxu0 0.0
      %1159 = vmatpush1.msra.mxu0 0.0
      %1160 = vmatprep.subr.mxu0 0.0
      %1161 = vmatpush1.msra.mxu0 0.0
      %1162 = vmatprep.subr.mxu0 0.0
      %1163 = vmatpush1.msra.mxu0 0.0
      %1164 = vmatprep.subr.mxu0 0.0
      %1165 = vmatpush1.msra.mxu0 0.0
      %1166 = vmatprep.subr.mxu0 0.0
      %1167 = vmatpush1.msra.mxu0 0.0
      %1168 = vmatprep.subr.mxu0 0.0
      %1169 = vmatpush1.msra.mxu0 0.0
      %1170 = vmatprep.subr.mxu0 0.0
      %1171 = vmatpush1.msra.mxu0 0.0
      %1172 = vmatprep.subr.mxu0 0.0
      %1173 = vmatpush1.msra.mxu0 0.0
      %1174 = vmatprep.subr.mxu0 0.0
      %1175 = vmatpush1.msra.mxu0 0.0
      %1176 = vmatprep.subr.mxu0 0.0
      %1177 = vmatpush1.msra.mxu0 0.0
      %1178 = vmatprep.subr.mxu0 0.0
      %1179 = vmatpush1.msra.mxu0 0.0
      %1180 = vmatprep.subr.mxu0 0.0
      %1181 = vmatpush1.msra.mxu0 0.0
      %1182 = vmatprep.subr.mxu0 0.0
      %1183 = vmatpush1.msra.mxu0 0.0
      %1184 = vmatprep.subr.mxu0 0.0
      %1185 = vmatpush1.msra.mxu0 0.0
      %1186 = vmatprep.mubr.f32.mxu0 0.0
      %v1187 = vand.u32 %v741, 4294901760
      %1188 = vmatmul.mubr.f32.gmra.mrb[0].mxu0 %v1187
      %v1189 = vpop.f32.mrb[0].mxu0
      %v1190 = vadd.f32 %v1118, %v1189
      %v1191 = vpop.f32.mrb[0].mxu0
      %1192 = vdwg.mxu0
      %v1193 = vxor.u32 %v1190, 2147483648
      %v1194 = vmul.f32 %v1193, 1.442695
      %v1195 = vpow.pop %v1194
      %v1196 = vadd.f32 %v1195, 1.0
      %v1197 = vrcp.pop %v1196
      %v1198 = vmul.f32 1.0, %v1197
      %v1199 = vlaneseq
      %v1200 = vshrl.u32 %v1199, 7
      %v1201 = vsub.s32 0, %v1200
      %v1202 = vrot.slane %v1198, %v1201
      %1204 = vbcast.lane.b32.xlu0 %v1202, 256
      %v1205 = vpop.permute.xlu0 %1204
      %v1208 = vunpack.c.l.s4 839922192
      %v1209 = vunpack.c.0.s8 %v1208
      %v1210 = vlaneseq
      %v1211 = vshrl.u32 %v1210, 7
      %v1212 = vsub.s32 %v1209, %v1211
      %v1213 = vrot.slane %v1205, %v1212
      %v1215 = vmul.f32 %v252, %v1213
      %1216 = vst [vmem:[%s251] sm:$0xff] %v1215
      %p1217 = scmp.lt.s32.totalorder %s17, 1
      %s1218 = scalar_select %p1217, %s17, 1
      %s1219 = smul.addr %s1218, 2
      %s1220 = smul.addr %s1219, 4
      %s1221 = scalar_lea.vmem %s6, %s1220
      // Predicated region
      $region45: #{wat_forward.1} parent=43 // pred_check
        %p1222 = pneg %p166
      $region46: #{wat_forward.1} parent=43 // pred_check_branch
        %1224 = sbr.rel (%p1222) target = $region48
      $region47: #{wat_forward.1} parent=43 // pred_region
        _
      $region48: #{wat_forward.1} parent=43 // pred_fallthru
        _
    $region44: #{wat_forward.1} parent=5 // pred_fallthru
      _
    %p1225 = scmp.le.s32.totalorder 2, %s12
    // Predicated region
    $region49: #{wat_forward.1} parent=5 // pred_check
      %p1226 = pneg %p1225
    $region50: #{wat_forward.1} parent=5 // pred_check_branch
      %1228 = sbr.rel (%p1226) target = $region52
    $region51: #{wat_forward.1} parent=5 // pred_region
      %s1229 = ssub.s32 %s12, 2
      // Predicated region
      $region53: #{wat_forward.1} parent=51 // pred_check
        %p1230 = pneg %p172
      $region54: #{wat_forward.1} parent=51 // pred_check_branch
        %1232 = sbr.rel (%p1230) target = $region56
      $region55: #{wat_forward.1} parent=51 // pred_region
        %p1233 = scmp.lt.s32.totalorder %s18, 1
        %s1234 = scalar_select %p1233, %s18, 1
        %s1235 = smul.addr %s1234, 2
        %s1236 = smul.addr %s1235, 4
        %s1237 = scalar_lea.vmem %s6, %s1236
      $region56: #{wat_forward.1} parent=51 // pred_fallthru
        _
    $region52: #{wat_forward.1} parent=5 // pred_fallthru
      _
  $region6: #{wat_forward.1} parent=0 // loop_footer
    %s16 = sadd.s32 1, %s12
  $region7: #{wat_forward.1} parent=0 // loop_footer_branch
    %11 = sbr.rel target = $region3
  $region8: #{wat_forward.1} parent=0 // loop_exit
    _

</llo_original>
